<compile_context>
chip_gen: v7x
topology: tpu7x:2x2x1
jax: 0.10.0
libtpu: 0.0.40
codegen_flags: <defaults>
</compile_context>

<pallas_src>
import math
import functools

import jax
import jax.numpy as jnp
from jax import lax
from jax.experimental import pallas as pl
from jax.experimental.pallas import tpu as pltpu

_LANE = 128
_TARGET_BLOCK_ELEMS = 1 << 20   # ~4 MiB per f32 block; ~16 MiB with double-buffered I/O
_MAX_BLOCK_ROWS = 1024


def _activation_kernel(x_ref, o_ref, *, act: str, compute_dtype):
    """Elementwise activation on one (block_rows, W) tile."""
    x = x_ref[...].astype(compute_dtype)
    if act == "relu":
        y = jnp.maximum(x, 0)
    elif act == "leakyrelu":
        # torch default negative_slope = 0.01
        y = jnp.where(x >= 0, x, 0.01 * x)
    elif act == "swish":
        y = x * jax.nn.sigmoid(x)          # single EUP logistic + VPU mul
    elif act == "gelu_new":
        # 0.5 * x * (1 + tanh(sqrt(2/pi) * (x + 0.044715 * x^3)))
        c = math.sqrt(2.0 / math.pi)
        y = 0.5 * x * (1.0 + jnp.tanh(c * (x + 0.044715 * x * x * x)))
    elif act == "gelu_orig":
        y = 0.5 * x * (1.0 + lax.erf(x * (1.0 / math.sqrt(2.0))))
    else:
        raise ValueError(f"unsupported activation_type: {act}")
    o_ref[...] = y.astype(o_ref.dtype)


def _choose_width(n: int):
    """Widest lane-dense last dim that divides n (None if not 128-divisible)."""
    for cand in (8192, 4096, 2048, 1024, 512, 256, 128):
        if n % cand == 0:
            return cand
    return None


def activations_forward(x: jax.Array, activation_type: str = "gelu_new") -> jax.Array:
    """Pallas equivalent of Activations(activation_type)(x). Any shape / dtype."""
    orig_shape = x.shape
    orig_dtype = x.dtype
    n = x.size
    if n == 0:
        return x

    flat = x.reshape(-1)
    width = _choose_width(n)
    padded = False
    if width is None:
        # Ragged total element count: pad the tail up to one lane (<=127 elems).
        width = _LANE
        n_pad = pl.cdiv(n, _LANE) * _LANE
        flat = jnp.pad(flat, (0, n_pad - n))
        padded = True

    rows = flat.shape[0] // width
    x2d = flat.reshape(rows, width)

    # Row tile: ~_TARGET_BLOCK_ELEMS elements per block, multiple of 8 sublanes.
    block_rows = max(8, min(_TARGET_BLOCK_ELEMS // width, _MAX_BLOCK_ROWS))
    if rows <= block_rows:
        block_rows = rows  # full-extent block along rows is always legal
    grid = (pl.cdiv(rows, block_rows),)   # ragged last block masked by Pallas

    # relu / leakyrelu are exact (and cheaper) in the native dtype; the
    # transcendental activations compute in f32 to match the reference.
    if activation_type in ("relu", "leakyrelu"):
        compute_dtype = orig_dtype
    else:
        compute_dtype = jnp.float32

    kernel = functools.partial(
        _activation_kernel, act=activation_type, compute_dtype=compute_dtype
    )

    out2d = pl.pallas_call(
        kernel,
        out_shape=jax.ShapeDtypeStruct((rows, width), orig_dtype),
        grid_spec=pltpu.PrefetchScalarGridSpec(
            num_scalar_prefetch=0,
            grid=grid,
            in_specs=[pl.BlockSpec((block_rows, width), lambda i: (i, 0))],
            out_specs=pl.BlockSpec((block_rows, width), lambda i: (i, 0)),
        ),
        compiler_params=pltpu.CompilerParams(
            dimension_semantics=("parallel",),   # megacore sharding on v7x
            vmem_limit_bytes=32 << 20,           # headroom on v5e's 16 MiB default
        ),
    )(x2d)

    out_flat = out2d.reshape(-1)
    if padded:
        out_flat = out_flat[:n]
    return out_flat.reshape(orig_shape)


def _reference(x, act):
    xf = x.astype(jnp.float32)
    if act == "relu":
        y = jnp.maximum(xf, 0.0)
    elif act == "leakyrelu":
        y = jnp.where(xf >= 0.0, xf, 0.01 * xf)
    elif act == "swish":
        y = xf * jax.nn.sigmoid(xf)
    elif act == "gelu_new":
        c = math.sqrt(2.0 / math.pi)
        y = 0.5 * xf * (1.0 + jnp.tanh(c * (xf + 0.044715 * xf ** 3)))
    elif act == "gelu_orig":
        y = 0.5 * xf * (1.0 + lax.erf(xf / math.sqrt(2.0)))
    else:
        raise ValueError(act)
    return y.astype(x.dtype)


if __name__ == "__main__":
    key = jax.random.PRNGKey(0)
    ok = True

    # NCHW-shaped input, as fed from a conv adapter stack (128-divisible path).
    x = jax.random.normal(key, (2, 4, 16, 16), dtype=jnp.float32)
    for act in ("gelu_new", "relu", "swish", "leakyrelu", "gelu_orig"):
        out = jax.block_until_ready(activations_forward(x, act))
        ref = _reference(x, act)
        assert out.shape == x.shape and out.dtype == x.dtype
        if not jnp.allclose(out, ref, atol=1e-5, rtol=1e-5):
            ok = False
            print(f"MISMATCH for {act} (f32)")

    # Ragged element count exercises the pad/slice fallback path.
    xr = jax.random.normal(jax.random.PRNGKey(1), (3, 5, 7), dtype=jnp.float32)
    outr = jax.block_until_ready(activations_forward(xr, "gelu_new"))
    if not jnp.allclose(outr, _reference(xr, "gelu_new"), atol=1e-5, rtol=1e-5):
        ok = False
        print("MISMATCH for ragged gelu_new")

    # bf16 relu computes natively in bf16 (exact vs f32-compute-then-cast).
    xb = jax.random.normal(jax.random.PRNGKey(2), (2, 4, 16, 16)).astype(jnp.bfloat16)
    outb = jax.block_until_ready(activations_forward(xb, "relu"))
    if not jnp.allclose(outb.astype(jnp.float32),
                        _reference(xb, "relu").astype(jnp.float32),
                        atol=1e-2, rtol=1e-2):
        ok = False
        print("MISMATCH for relu (bf16)")

    if ok:
        print("KERNEL_OK")
</pallas_src>

<mosaic_0001>
module attributes {stable_mosaic.version = 11 : i64} {
  func.func @_activation_kernel(%arg0: i32, %arg1: memref<1x2048xf32, #tpu.memory_space<vmem>>, %arg2: memref<1x2048xf32, #tpu.memory_space<vmem>>) attributes {dimension_semantics = [#tpu.dimension_semantics<parallel>], iteration_bounds = array<i64: 1>, scalar_prefetch = 0 : i64, scratch_operands = 0 : i64, tpu.core_type = #tpu.core_type<tc>, window_params = [{transform_indices = @transform_0, window_bounds = array<i64: 1, 2048>}, {transform_indices = @transform_1, window_bounds = array<i64: 1, 2048>}]} {
    %c0 = arith.constant 0 : index
    %c0_0 = arith.constant 0 : index
    %0 = vector.load %arg1[%c0, %c0_0] : memref<1x2048xf32, #tpu.memory_space<vmem>>, vector<1x2048xf32>
    %cst = arith.constant 5.000000e-01 : f32
    %1 = vector.broadcast %cst : f32 to vector<1x2048xf32>
    %2 = arith.mulf %1, %0 : vector<1x2048xf32>
    %cst_1 = arith.constant 4.471500e-02 : f32
    %3 = vector.broadcast %cst_1 : f32 to vector<1x2048xf32>
    %4 = arith.mulf %3, %0 : vector<1x2048xf32>
    %5 = arith.mulf %4, %0 : vector<1x2048xf32>
    %6 = arith.mulf %5, %0 : vector<1x2048xf32>
    %7 = arith.addf %0, %6 : vector<1x2048xf32>
    %cst_2 = arith.constant 0.797884583 : f32
    %8 = vector.broadcast %cst_2 : f32 to vector<1x2048xf32>
    %9 = arith.mulf %8, %7 : vector<1x2048xf32>
    %10 = math.tanh %9 : vector<1x2048xf32>
    %cst_3 = arith.constant 1.000000e+00 : f32
    %11 = vector.broadcast %cst_3 : f32 to vector<1x2048xf32>
    %12 = arith.addf %11, %10 : vector<1x2048xf32>
    %13 = arith.mulf %2, %12 : vector<1x2048xf32>
    %c0_4 = arith.constant 0 : index
    %c0_5 = arith.constant 0 : index
    %14 = vector.load %arg2[%c0_4, %c0_5] : memref<1x2048xf32, #tpu.memory_space<vmem>>, vector<1x2048xf32>
    tpu.vector_store %arg2[%c0_4, %c0_5], %13 {strides = array<i32>} : memref<1x2048xf32, #tpu.memory_space<vmem>>, vector<1x2048xf32>,
    return
  }
  func.func @transform_0(%arg0: i32) -> (i32, i32) {
    %c0_i32 = arith.constant 0 : i32
    %c0_i32_0 = arith.constant 0 : i32
    return %arg0, %c0_i32 : i32, i32
  }
  func.func @transform_1(%arg0: i32) -> (i32, i32) {
    %c0_i32 = arith.constant 0 : i32
    %c0_i32_0 = arith.constant 0 : i32
    return %arg0, %c0_i32 : i32, i32
  }
}

</mosaic_0001>

<llo_original>
// kernel: tpu_custom_call.1
$region0: #{tpu_custom_call.1}
  #allocation0 [shape = 'u32[]', space=smem, size = 0x4, offset = 0x4, fixed_abs, tag = 'smem constant byte address 0x4 - core index']
  #allocation1 [shape = 'u32[144,128]{1,0:T(1,128)}', space=vmem, size = 0x12000, scoped, tag = 'internal scratch']
  %s0 = inlined_call_operand.hbm [shape: f32[1,2048], index: 0, kind: input, shape index: {}]
  %s1 = inlined_call_operand.hbm [shape: f32[1,2048], index: 1, kind: output, shape index: {}]
  %s2 = sld [smem:[#allocation0]]
  $region18: #{tpu_custom_call.1} parent=0
    _
  %s4 = ssub.s32 1, %s2
  %s5 = scalar_select 0, %s4, %s2
  $region1: #{tpu_custom_call.1} parent=0
    #allocation2 [shape = 'u8[8192]{0}', space=vmem, size = 0x2000, scoped, tag = 'input window, operand 0, single buffered']
    #allocation3 [shape = 's32[1]{0}', space=sflag, size = 0x4, scoped, tag = 'scoped memory for tpu_custom_call.1']
    #allocation4 [shape = 's32[1]{0}', space=sflag, size = 0x4, scoped, tag = 'scoped memory for tpu_custom_call.1']
    #allocation5 [shape = 'u8[8192]{0}', space=vmem, size = 0x2000, scoped, tag = 'output window, operand 0, single buffered']
    %6 = vsyncpa [#allocation3], 0
    %7 = vsyncpa [#allocation4], 0
    // Predicated region
    $region2: #{tpu_custom_call.1} parent=1 // pred_check
      _
    $region3: #{tpu_custom_call.1} parent=1 // pred_check_branch
      %9 = sbr.rel (0) target = $region5
    $region4: #{tpu_custom_call.1} parent=1 // pred_region
      %s11 = ssub.s32 256, 256
      %12 = vsyncadd [#allocation3], %s11
      %s14 = sshll.u32 [#allocation2], 4
      %s15 = int_to_ptr.vmem [resolvable:$true] %s14
      %17 = dma.hbm_to_vmem [thread:$0]  %s0, 256, %s15, [#allocation3]
    $region5: #{tpu_custom_call.1} parent=1 // pred_fallthru
      _
    // Predicated region
    $region6: #{tpu_custom_call.1} parent=1 // pred_check
      _
    $region7: #{tpu_custom_call.1} parent=1 // pred_check_branch
      %19 = sbr.rel (0) target = $region9
    $region8: #{tpu_custom_call.1} parent=1 // pred_region
      %20 = dma.done [#allocation3], 256
    $region9: #{tpu_custom_call.1} parent=1 // pred_fallthru
      _
    %v21 = vld [vmem:[#allocation2] sm:$0xff]
    %v22 = vld [vmem:[#allocation2 + $0x8] sm:$0xff]
    %v23 = vmul.f32 %v21, 0.5
    %v24 = vmul.f32 %v22, 0.5
    %v25 = vmul.f32 %v21, 0.044715
    %v26 = vmul.f32 %v22, 0.044715
    %v27 = vmul.f32 %v25, %v21
    %v28 = vmul.f32 %v26, %v22
    %v29 = vmul.f32 %v27, %v21
    %v30 = vmul.f32 %v28, %v22
    %v31 = vadd.f32 %v21, %v29
    %v32 = vadd.f32 %v22, %v30
    %v33 = vmul.f32 %v31, 0.7978846
    %v34 = vmul.f32 %v32, 0.7978846
    %v35 = vtanh.pop %v33
    %v36 = vtanh.pop %v34
    %v37 = vadd.f32 %v35, 1.0
    %v38 = vadd.f32 %v36, 1.0
    %v39 = vmul.f32 %v23, %v37
    %v40 = vmul.f32 %v24, %v38
    %41 = vst [vmem:[#allocation5] sm:$0xff] %v39
    %42 = vst [vmem:[#allocation5 + $0x8] sm:$0xff] %v40
    // Predicated region
    $region10: #{tpu_custom_call.1} parent=1 // pred_check
      _
    $region11: #{tpu_custom_call.1} parent=1 // pred_check_branch
      %44 = sbr.rel (0) target = $region13
    $region12: #{tpu_custom_call.1} parent=1 // pred_region
      %s46 = ssub.s32 256, 256
      %47 = vsyncadd [#allocation4], %s46
      %s49 = sshll.u32 [#allocation5], 4
      %s50 = int_to_ptr.vmem [resolvable:$true] %s49
      %52 = dma.vmem_to_hbm [thread:$0]  %s50, 256, %s1, [#allocation4]
    $region13: #{tpu_custom_call.1} parent=1 // pred_fallthru
      _
    // Predicated region
    $region14: #{tpu_custom_call.1} parent=1 // pred_check
      _
    $region15: #{tpu_custom_call.1} parent=1 // pred_check_branch
      %54 = sbr.rel (0) target = $region17
    $region16: #{tpu_custom_call.1} parent=1 // pred_region
      %55 = dma.done [#allocation4], 256
    $region17: #{tpu_custom_call.1} parent=1 // pred_fallthru
      _
    %56 = vsyncpa [#allocation3], 1
    %57 = vsyncpa [#allocation4], 1

</llo_original>
